<compile_context>
chip_gen: v6e
topology: v6e:2x2x1
jax: 0.10.0
libtpu: 0.0.40
codegen_flags: <defaults>
</compile_context>

<pallas_src>
import functools

import jax
import jax.numpy as jnp
from jax.experimental import pallas as pl
from jax.experimental.pallas import tpu as pltpu


H1, H2, H3 = 256, 128, 64
H3P = 128                      # third layer output padded 64 -> 128 lanes
SLAB = H1 + H2 + H3P           # 512 pooled-embedding lanes (448 real + 64 pad)
SCORE_LANES = 128              # score slab width (4 real lanes + pad)


# ----------------------------- Pallas kernel --------------------------------

def _make_dsnet_kernel(pooling_method: str):
    def dsnet_kernel(
        x_ref,                    # (Bt, N, F)  float32
        w1_ref, b1_ref,           # (F, 256) cd, (1, 256) f32
        w2_ref, b2_ref,           # (256, 128) cd, (1, 128) f32
        w3_ref, b3_ref,           # (128, 128) cd, (1, 128) f32  (out padded 64->128)
        wfc_ref, bfc_ref,         # (512, 128) cd, (1, 128) f32  (fused fc1/fc2/fc3)
        pooled_ref,               # (Bt, 512) f32
        score_ref,                # (Bt, 128) f32
    ):
        Bt, N, F = x_ref.shape
        cd = w1_ref.dtype         # bf16 (fast path) or f32 (exact path)

        # (Bt, N, F) -> (Bt*N, F): N == sublane tile, so this is layout-free.
        x = x_ref[...].reshape(Bt * N, F).astype(cd)

        # Three fully-connected + ReLU layers; MXU operands in `cd`, f32 accum,
        # elementwise work (bias, ReLU, pooling) in f32.
        h1 = jnp.maximum(
            jnp.dot(x, w1_ref[...], preferred_element_type=jnp.float32)
            + b1_ref[...], 0.0)                       # (Bt*N, 256) f32
        h2 = jnp.maximum(
            jnp.dot(h1.astype(cd), w2_ref[...], preferred_element_type=jnp.float32)
            + b2_ref[...], 0.0)                       # (Bt*N, 128) f32
        h3 = jnp.maximum(
            jnp.dot(h2.astype(cd), w3_ref[...], preferred_element_type=jnp.float32)
            + b3_ref[...], 0.0)                       # (Bt*N, 128) f32, last 64 lanes 0

        # Dropout (p=0.5) is identity at inference time.
        def pool(h):
            hr = h.reshape(Bt, N, h.shape[-1])        # instance axis -> sublane axis
            if pooling_method == "max":
                return jnp.max(hr, axis=1)
            if pooling_method == "mean":
                return jnp.mean(hr, axis=1)
            return jnp.sum(hr, axis=1)                # "sum"

        # Lane-dense pooled slab: [p1 | p2 | p3(+pad)] -> (Bt, 512), f32.
        p_all = jnp.concatenate([pool(h1), pool(h2), pool(h3)], axis=-1)
        pooled_ref[...] = p_all

        # Fused fc1/fc2/fc3: one small matmul, one vector sigmoid on the EUP.
        raw = jnp.dot(p_all.astype(cd), wfc_ref[...],
                      preferred_element_type=jnp.float32) + bfc_ref[...]
        sig = jax.nn.sigmoid(raw)                     # (Bt, 128); lanes 0..2 = y1..y3
        y4 = (sig[:, 0:1] + sig[:, 1:2] + sig[:, 2:3]) * (1.0 / 3.0)
        lane = jax.lax.broadcasted_iota(jnp.int32, sig.shape, 1)
        score_ref[...] = jnp.where(lane == 3, jnp.broadcast_to(y4, sig.shape), sig)

    return dsnet_kernel


# --------------------------- one-time weight packing --------------------------

def prepare_params(params, compute_dtype=jnp.bfloat16):
    """Pack raw (in, out) linear params into the kernel's fused/padded layout.

    Call ONCE (e.g. at model-load time); the forward path does no weight
    massaging.  compute_dtype is the MXU-operand dtype (bf16 default, f32 for
    an exact match of the torch reference); biases always stay f32.
    """
    (w1, b1, w2, b2, w3, b3, wf1, bf1, wf2, bf2, wf3, bf3) = params
    cd = compute_dtype

    # Pad third layer output 64 -> 128 lanes (zero weights/bias => exact zeros).
    w3p = jnp.pad(w3, ((0, 0), (0, H3P - H3)))
    b3p = jnp.pad(b3, ((0, 0), (0, H3P - H3)))

    # Fuse the three fc scoring heads into one (512, 128) matrix.
    wfc = jnp.zeros((SLAB, SCORE_LANES), jnp.float32)
    wfc = wfc.at[0:H1, 0:1].set(wf1)                       # (256, 1)
    wfc = wfc.at[H1:H1 + H2, 1:2].set(wf2)                 # (128, 1)
    wfc = wfc.at[H1 + H2:H1 + H2 + H3, 2:3].set(wf3)       # (64, 1)
    bfc = jnp.zeros((1, SCORE_LANES), jnp.float32)
    bfc = bfc.at[0, 0].set(bf1[0, 0]).at[0, 1].set(bf2[0, 0]).at[0, 2].set(bf3[0, 0])

    return (
        w1.astype(cd), b1.astype(jnp.float32),
        w2.astype(cd), b2.astype(jnp.float32),
        w3p.astype(cd), b3p.astype(jnp.float32),
        wfc.astype(cd), bfc.astype(jnp.float32),
    )


# --------------------------- bag-block selection ------------------------------

def _choose_bag_block(B, bag_block):
    """Per-grid-step bag count.

    * B <= bag_block: single step; block dim == full array dim (always a legal
      block shape, no 8-alignment needed on Bt).
    * otherwise: an 8-aligned Bt (keeps the (Bt, 512)/(Bt, 128) output blocks
      tiling-legal), preferring one that divides B exactly (skips the HBM pad
      pass over x) and giving >= 2 grid steps so v7x's two TensorCores both
      get work under dimension_semantics=("parallel",).
    """
    if B <= bag_block:
        return B
    Bt = max(8, (min(bag_block, B // 2) // 8) * 8)
    for d in range(Bt, 7, -8):
        if B % d == 0 and 2 * d >= Bt:
            return d
    return Bt                     # fall back to padding B up to a multiple of Bt


# ------------------------------- forward --------------------------------------

def dsnet_forward(x, packed_params, pooling_method="max", bag_block=256):
    """x: (B, N, F) float32, packed_params from prepare_params().

    Returns (x1, x2, x3, x4, embedding) like the torch module.
    """
    if pooling_method not in ("max", "mean", "sum"):
        raise ValueError("Invalid Pooling method")

    B, N, F = x.shape
    (w1, b1, w2, b2, w3p, b3p, wfc, bfc) = packed_params
    x = x.astype(jnp.float32)

    # Block the grid over bags; avoid padding x when an 8-aligned divisor works.
    Bt = _choose_bag_block(B, bag_block)
    n_steps = -(-B // Bt)
    B_pad = n_steps * Bt
    if B_pad != B:
        x = jnp.pad(x, ((0, B_pad - B), (0, 0), (0, 0)))
    grid = (n_steps,)

    # Grid-invariant weights/biases: constant index_map, one (small) block each.
    w2d = lambda arr: pl.BlockSpec(arr.shape, lambda b: (0, 0))

    in_specs = [
        # One bag-block per step; N and F equal the full array dims, so no
        # feature/instance padding is needed in HBM.
        pl.BlockSpec((Bt, N, F), lambda b: (b, 0, 0)),
        w2d(w1), w2d(b1), w2d(w2), w2d(b2), w2d(w3p), w2d(b3p),
        w2d(wfc), w2d(bfc),
    ]
    out_specs = (
        pl.BlockSpec((Bt, SLAB), lambda b: (b, 0)),
        pl.BlockSpec((Bt, SCORE_LANES), lambda b: (b, 0)),
    )
    out_shape = (
        jax.ShapeDtypeStruct((B_pad, SLAB), jnp.float32),
        jax.ShapeDtypeStruct((B_pad, SCORE_LANES), jnp.float32),
    )

    pooled, scores = pl.pallas_call(
        _make_dsnet_kernel(pooling_method),
        out_shape=out_shape,
        grid_spec=pltpu.PrefetchScalarGridSpec(
            num_scalar_prefetch=0,
            grid=grid,
            in_specs=in_specs,
            out_specs=out_specs,
        ),
        compiler_params=pltpu.CompilerParams(
            dimension_semantics=("parallel",),
            # Big bag blocks (up to ~512) keep f32 intermediates well under
            # this; set explicitly so v5e's 16 MiB scoped default never binds.
            vmem_limit_bytes=48 * 1024 * 1024,
        ),
    )(x, w1, b1, w2, b2, w3p, b3p, wfc, bfc)

    pooled = pooled[:B]                      # (B, 512)
    scores = scores[:B]                      # (B, 128)
    embedding = pooled[:, :H1 + H2 + H3]     # (B, 448)
    y1 = scores[:, 0:1]
    y2 = scores[:, 1:2]
    y3 = scores[:, 2:3]
    y4 = scores[:, 3:4]
    return (y1, y2, y3, y4, embedding)


# --------------------------- parameter init -----------------------------------

def init_params(key, in_features):
    """Deterministic init mimicking nn.Linear.reset_parameters (uniform ±1/sqrt(fan_in)).
    Weights are stored transposed as (in, out)."""
    def linear(key, fan_in, fan_out):
        kw, kb = jax.random.split(key)
        bound = fan_in ** -0.5
        w = jax.random.uniform(kw, (fan_in, fan_out), jnp.float32, -bound, bound)
        b = jax.random.uniform(kb, (1, fan_out), jnp.float32, -bound, bound)
        return w, b

    keys = jax.random.split(key, 6)
    w1, b1 = linear(keys[0], in_features, H1)
    w2, b2 = linear(keys[1], H1, H2)
    w3, b3 = linear(keys[2], H2, H3)
    wf1, bf1 = linear(keys[3], H1, 1)   # fc1: Linear(256, 1)
    wf2, bf2 = linear(keys[4], H2, 1)   # fc2: Linear(128, 1)
    wf3, bf3 = linear(keys[5], H3, 1)   # fc3: Linear(64, 1)
    return (w1, b1, w2, b2, w3, b3, wf1, bf1, wf2, bf2, wf3, bf3)


# --------------------------- plain-JAX reference --------------------------------

def dsnet_reference(x, params, pooling_method="max", compute_dtype=jnp.float32):
    """Reference with the same operand dtype / f32-accumulation as the kernel."""
    (w1, b1, w2, b2, w3, b3, wf1, bf1, wf2, bf2, wf3, bf3) = params
    mm = lambda a, w: jnp.dot(a.astype(compute_dtype), w.astype(compute_dtype),
                              preferred_element_type=jnp.float32)
    h1 = jax.nn.relu(mm(x, w1) + b1)          # (B, N, 256)
    h2 = jax.nn.relu(mm(h1, w2) + b2)         # (B, N, 128)
    h3 = jax.nn.relu(mm(h2, w3) + b3)         # (B, N, 64)
    if pooling_method == "max":
        pool = lambda h: jnp.max(h, axis=1)
    elif pooling_method == "mean":
        pool = lambda h: jnp.mean(h, axis=1)
    else:
        pool = lambda h: jnp.sum(h, axis=1)
    p1, p2, p3 = pool(h1), pool(h2), pool(h3)
    emb = jnp.concatenate([p1, p2, p3], axis=-1)
    y1 = jax.nn.sigmoid(mm(p1, wf1) + bf1)
    y2 = jax.nn.sigmoid(mm(p2, wf2) + bf2)
    y3 = jax.nn.sigmoid(mm(p3, wf3) + bf3)
    y4 = (y1 + y2 + y3) / 3.0
    return y1, y2, y3, y4, emb


# --------------------------------- main ----------------------------------------

if __name__ == "__main__":
    key = jax.random.PRNGKey(0)
    k_x, k_p = jax.random.split(key)

    B, N, F = 2, 8, 32          # 2 bags, 8 instances each, 32 input features
    x = jax.random.normal(k_x, (B, N, F), jnp.float32)
    params = init_params(k_p, F)

    fwd = jax.jit(dsnet_forward, static_argnames=("pooling_method", "bag_block"))

    # --- fast path: bf16 MXU operands, f32 accumulation -----------------------
    packed_bf16 = prepare_params(params, compute_dtype=jnp.bfloat16)
    y1, y2, y3, y4, embedding = fwd(x, packed_bf16,
                                    pooling_method="max", bag_block=256)
    jax.block_until_ready((y1, y2, y3, y4, embedding))

    assert y1.shape == (B, 1) and y2.shape == (B, 1) and y3.shape == (B, 1)
    assert y4.shape == (B, 1) and embedding.shape == (B, H1 + H2 + H3)

    # Check against a reference using the same bf16-operand / f32-accum dots.
    r1, r2, r3, r4, remb = dsnet_reference(x, params, "max",
                                           compute_dtype=jnp.bfloat16)
    for got, ref in ((y1, r1), (y2, r2), (y3, r3), (y4, r4), (embedding, remb)):
        err = float(jnp.max(jnp.abs(got - ref)))
        assert err < 2e-3, f"bf16 path mismatch vs reference: max abs err = {err}"

    # --- exact path: f32 MXU operands (matches the torch model bit-for-bit
    #     up to accumulation order) ---------------------------------------------
    packed_f32 = prepare_params(params, compute_dtype=jnp.float32)
    z1, z2, z3, z4, zemb = fwd(x, packed_f32,
                               pooling_method="max", bag_block=256)
    jax.block_until_ready((z1, z2, z3, z4, zemb))
    s1, s2, s3, s4, semb = dsnet_reference(x, params, "max",
                                           compute_dtype=jnp.float32)
    for got, ref in ((z1, s1), (z2, s2), (z3, s3), (z4, s4), (zemb, semb)):
        err = float(jnp.max(jnp.abs(got - ref)))
        assert err < 2e-3, f"f32 path mismatch vs reference: max abs err = {err}"

    print("KERNEL_OK")
</pallas_src>

<mosaic_0001>
module attributes {stable_mosaic.version = 11 : i64} {
  func.func @dsnet_kernel(%arg0: i32, %arg1: memref<2x8x32xf32, #tpu.memory_space<vmem>>, %arg2: memref<32x256xbf16, #tpu.memory_space<vmem>>, %arg3: memref<1x256xf32, #tpu.memory_space<vmem>>, %arg4: memref<256x128xbf16, #tpu.memory_space<vmem>>, %arg5: memref<1x128xf32, #tpu.memory_space<vmem>>, %arg6: memref<128x128xbf16, #tpu.memory_space<vmem>>, %arg7: memref<1x128xf32, #tpu.memory_space<vmem>>, %arg8: memref<512x128xbf16, #tpu.memory_space<vmem>>, %arg9: memref<1x128xf32, #tpu.memory_space<vmem>>, %arg10: memref<2x512xf32, #tpu.memory_space<vmem>>, %arg11: memref<2x128xf32, #tpu.memory_space<vmem>>) attributes {dimension_semantics = [#tpu.dimension_semantics<parallel>], iteration_bounds = array<i64: 1>, scalar_prefetch = 0 : i64, scratch_operands = 0 : i64, tpu.core_type = #tpu.core_type<tc>, window_params = [{transform_indices = @transform_0, window_bounds = array<i64: 2, 8, 32>}, {pipeline_mode = #tpu.pipeline_mode<synchronous>, transform_indices = @transform_1, window_bounds = array<i64: 32, 256>}, {pipeline_mode = #tpu.pipeline_mode<synchronous>, transform_indices = @transform_2, window_bounds = array<i64: 1, 256>}, {pipeline_mode = #tpu.pipeline_mode<synchronous>, transform_indices = @transform_3, window_bounds = array<i64: 256, 128>}, {pipeline_mode = #tpu.pipeline_mode<synchronous>, transform_indices = @transform_4, window_bounds = array<i64: 1, 128>}, {pipeline_mode = #tpu.pipeline_mode<synchronous>, transform_indices = @transform_5, window_bounds = array<i64: 128, 128>}, {pipeline_mode = #tpu.pipeline_mode<synchronous>, transform_indices = @transform_6, window_bounds = array<i64: 1, 128>}, {pipeline_mode = #tpu.pipeline_mode<synchronous>, transform_indices = @transform_7, window_bounds = array<i64: 512, 128>}, {pipeline_mode = #tpu.pipeline_mode<synchronous>, transform_indices = @transform_8, window_bounds = array<i64: 1, 128>}, {transform_indices = @transform_9, window_bounds = array<i64: 2, 512>}, {transform_indices = @transform_10, window_bounds = array<i64: 2, 128>}]} {
    %c0 = arith.constant 0 : index
    %c0_0 = arith.constant 0 : index
    %c0_1 = arith.constant 0 : index
    %0 = vector.load %arg1[%c0, %c0_0, %c0_1] : memref<2x8x32xf32, #tpu.memory_space<vmem>>, vector<2x8x32xf32>
    %1 = vector.shape_cast %0 : vector<2x8x32xf32> to vector<16x32xf32>
    %2 = arith.truncf %1 : vector<16x32xf32> to vector<16x32xbf16>
    %c0_2 = arith.constant 0 : index
    %c0_3 = arith.constant 0 : index
    %3 = vector.load %arg2[%c0_2, %c0_3] : memref<32x256xbf16, #tpu.memory_space<vmem>>, vector<32x256xbf16>
    %cst = arith.constant dense<0.000000e+00> : vector<16x256xf32>
    %4 = tpu.matmul %2, %3, %cst {dimension_numbers = #tpu.dot_dimension_numbers<[1], [0], [0], [1], [0, 0, 1, 1], [], []>} : vector<16x32xbf16>, vector<32x256xbf16>, vector<16x256xf32> -> vector<16x256xf32>
    %c0_4 = arith.constant 0 : index
    %c0_5 = arith.constant 0 : index
    %5 = vector.load %arg3[%c0_4, %c0_5] : memref<1x256xf32, #tpu.memory_space<vmem>>, vector<1x256xf32>
    %6 = vector.broadcast %5 : vector<1x256xf32> to vector<16x256xf32>
    %7 = arith.addf %4, %6 : vector<16x256xf32>
    %cst_6 = arith.constant 0.000000e+00 : f32
    %8 = vector.broadcast %cst_6 : f32 to vector<16x256xf32>
    %9 = arith.maximumf %7, %8 : vector<16x256xf32>
    %10 = arith.truncf %9 : vector<16x256xf32> to vector<16x256xbf16>
    %c0_7 = arith.constant 0 : index
    %c0_8 = arith.constant 0 : index
    %11 = vector.load %arg4[%c0_7, %c0_8] : memref<256x128xbf16, #tpu.memory_space<vmem>>, vector<256x128xbf16>
    %cst_9 = arith.constant dense<0.000000e+00> : vector<16x128xf32>
    %12 = tpu.matmul %10, %11, %cst_9 {dimension_numbers = #tpu.dot_dimension_numbers<[1], [0], [0], [1], [0, 0, 1, 1], [], []>} : vector<16x256xbf16>, vector<256x128xbf16>, vector<16x128xf32> -> vector<16x128xf32>
    %c0_10 = arith.constant 0 : index
    %c0_11 = arith.constant 0 : index
    %13 = vector.load %arg5[%c0_10, %c0_11] : memref<1x128xf32, #tpu.memory_space<vmem>>, vector<1x128xf32>
    %14 = vector.broadcast %13 : vector<1x128xf32> to vector<16x128xf32>
    %15 = arith.addf %12, %14 : vector<16x128xf32>
    %cst_12 = arith.constant 0.000000e+00 : f32
    %16 = vector.broadcast %cst_12 : f32 to vector<16x128xf32>
    %17 = arith.maximumf %15, %16 : vector<16x128xf32>
    %18 = arith.truncf %17 : vector<16x128xf32> to vector<16x128xbf16>
    %c0_13 = arith.constant 0 : index
    %c0_14 = arith.constant 0 : index
    %19 = vector.load %arg6[%c0_13, %c0_14] : memref<128x128xbf16, #tpu.memory_space<vmem>>, vector<128x128xbf16>
    %cst_15 = arith.constant dense<0.000000e+00> : vector<16x128xf32>
    %20 = tpu.matmul %18, %19, %cst_15 {dimension_numbers = #tpu.dot_dimension_numbers<[1], [0], [0], [1], [0, 0, 1, 1], [], []>} : vector<16x128xbf16>, vector<128x128xbf16>, vector<16x128xf32> -> vector<16x128xf32>
    %c0_16 = arith.constant 0 : index
    %c0_17 = arith.constant 0 : index
    %21 = vector.load %arg7[%c0_16, %c0_17] : memref<1x128xf32, #tpu.memory_space<vmem>>, vector<1x128xf32>
    %22 = vector.broadcast %21 : vector<1x128xf32> to vector<16x128xf32>
    %23 = arith.addf %20, %22 : vector<16x128xf32>
    %cst_18 = arith.constant 0.000000e+00 : f32
    %24 = vector.broadcast %cst_18 : f32 to vector<16x128xf32>
    %25 = arith.maximumf %23, %24 : vector<16x128xf32>
    %26 = vector.shape_cast %9 : vector<16x256xf32> to vector<2x8x256xf32>
    %cst_19 = arith.constant dense<0xFF800000> : vector<2x256xf32>
    %27 = vector.multi_reduction <maximumf>, %26, %cst_19 [1] : vector<2x8x256xf32> to vector<2x256xf32>
    %28 = vector.shape_cast %17 : vector<16x128xf32> to vector<2x8x128xf32>
    %cst_20 = arith.constant dense<0xFF800000> : vector<2x128xf32>
    %29 = vector.multi_reduction <maximumf>, %28, %cst_20 [1] : vector<2x8x128xf32> to vector<2x128xf32>
    %30 = vector.shape_cast %25 : vector<16x128xf32> to vector<2x8x128xf32>
    %cst_21 = arith.constant dense<0xFF800000> : vector<2x128xf32>
    %31 = vector.multi_reduction <maximumf>, %30, %cst_21 [1] : vector<2x8x128xf32> to vector<2x128xf32>
    %32 = tpu.concatenate %27, %29, %31 in 1 : vector<2x256xf32>, vector<2x128xf32>, vector<2x128xf32> -> vector<2x512xf32>
    %c0_22 = arith.constant 0 : index
    %c0_23 = arith.constant 0 : index
    %33 = vector.load %arg10[%c0_22, %c0_23] : memref<2x512xf32, #tpu.memory_space<vmem>>, vector<2x512xf32>
    tpu.vector_store %arg10[%c0_22, %c0_23], %32 {strides = array<i32>} : memref<2x512xf32, #tpu.memory_space<vmem>>, vector<2x512xf32>,
    %34 = arith.truncf %32 : vector<2x512xf32> to vector<2x512xbf16>
    %c0_24 = arith.constant 0 : index
    %c0_25 = arith.constant 0 : index
    %35 = vector.load %arg8[%c0_24, %c0_25] : memref<512x128xbf16, #tpu.memory_space<vmem>>, vector<512x128xbf16>
    %cst_26 = arith.constant dense<0.000000e+00> : vector<2x128xf32>
    %36 = tpu.matmul %34, %35, %cst_26 {dimension_numbers = #tpu.dot_dimension_numbers<[1], [0], [0], [1], [0, 0, 1, 1], [], []>} : vector<2x512xbf16>, vector<512x128xbf16>, vector<2x128xf32> -> vector<2x128xf32>
    %c0_27 = arith.constant 0 : index
    %c0_28 = arith.constant 0 : index
    %37 = vector.load %arg9[%c0_27, %c0_28] : memref<1x128xf32, #tpu.memory_space<vmem>>, vector<1x128xf32>
    %38 = vector.broadcast %37 : vector<1x128xf32> to vector<2x128xf32>
    %39 = arith.addf %36, %38 : vector<2x128xf32>
    %40 = arith.negf %39 : vector<2x128xf32>
    %41 = math.exp %40 : vector<2x128xf32>
    %cst_29 = arith.constant 1.000000e+00 : f32
    %42 = vector.broadcast %cst_29 : f32 to vector<2x128xf32>
    %43 = arith.addf %42, %41 : vector<2x128xf32>
    %44 = arith.divf %42, %43 : vector<2x128xf32>
    %45 = vector.extract_strided_slice %44 {offsets = [0, 0], sizes = [2, 1], strides = [1, 1]} : vector<2x128xf32> to vector<2x1xf32>
    %46 = vector.extract_strided_slice %44 {offsets = [0, 1], sizes = [2, 1], strides = [1, 1]} : vector<2x128xf32> to vector<2x1xf32>
    %47 = arith.addf %45, %46 : vector<2x1xf32>
    %48 = vector.extract_strided_slice %44 {offsets = [0, 2], sizes = [2, 1], strides = [1, 1]} : vector<2x128xf32> to vector<2x1xf32>
    %49 = arith.addf %47, %48 : vector<2x1xf32>
    %cst_30 = arith.constant 0.333333343 : f32
    %50 = vector.broadcast %cst_30 : f32 to vector<2x1xf32>
    %51 = arith.mulf %49, %50 : vector<2x1xf32>
    %52 = tpu.iota {dimensions = array<i32: 1>} : vector<2x128xi32>
    %c3_i32 = arith.constant 3 : i32
    %53 = vector.broadcast %c3_i32 : i32 to vector<2x128xi32>
    %54 = arith.cmpi eq, %52, %53 : vector<2x128xi32>
    %55 = vector.shape_cast %51 : vector<2x1xf32> to vector<2x1xf32>
    %56 = vector.broadcast %55 : vector<2x1xf32> to vector<2x128xf32>
    %57 = arith.select %54, %56, %44 : vector<2x128xi1>, vector<2x128xf32>
    %c0_31 = arith.constant 0 : index
    %c0_32 = arith.constant 0 : index
    %58 = vector.load %arg11[%c0_31, %c0_32] : memref<2x128xf32, #tpu.memory_space<vmem>>, vector<2x128xf32>
    tpu.vector_store %arg11[%c0_31, %c0_32], %57 {strides = array<i32>} : memref<2x128xf32, #tpu.memory_space<vmem>>, vector<2x128xf32>,
    return
  }
  func.func @transform_0(%arg0: i32) -> (i32, i32, i32) {
    %c0_i32 = arith.constant 0 : i32
    %c0_i32_0 = arith.constant 0 : i32
    %c0_i32_1 = arith.constant 0 : i32
    return %arg0, %c0_i32, %c0_i32_0 : i32, i32, i32
  }
  func.func @transform_1(%arg0: i32) -> (i32, i32) {
    %c0_i32 = arith.constant 0 : i32
    %c0_i32_0 = arith.constant 0 : i32
    %c0_i32_1 = arith.constant 0 : i32
    return %c0_i32, %c0_i32_0 : i32, i32
  }
  func.func @transform_2(%arg0: i32) -> (i32, i32) {
    %c0_i32 = arith.constant 0 : i32
    %c0_i32_0 = arith.constant 0 : i32
    %c0_i32_1 = arith.constant 0 : i32
    return %c0_i32, %c0_i32_0 : i32, i32
  }
  func.func @transform_3(%arg0: i32) -> (i32, i32) {
    %c0_i32 = arith.constant 0 : i32
    %c0_i32_0 = arith.constant 0 : i32
    %c0_i32_1 = arith.constant 0 : i32
    return %c0_i32, %c0_i32_0 : i32, i32
  }
  func.func @transform_4(%arg0: i32) -> (i32, i32) {
    %c0_i32 = arith.constant 0 : i32
    %c0_i32_0 = arith.constant 0 : i32
    %c0_i32_1 = arith.constant 0 : i32
    return %c0_i32, %c0_i32_0 : i32, i32
  }
  func.func @transform_5(%arg0: i32) -> (i32, i32) {
    %c0_i32 = arith.constant 0 : i32
    %c0_i32_0 = arith.constant 0 : i32
    %c0_i32_1 = arith.constant 0 : i32
    return %c0_i32, %c0_i32_0 : i32, i32
  }
  func.func @transform_6(%arg0: i32) -> (i32, i32) {
    %c0_i32 = arith.constant 0 : i32
    %c0_i32_0 = arith.constant 0 : i32
    %c0_i32_1 = arith.constant 0 : i32
    return %c0_i32, %c0_i32_0 : i32, i32
  }
  func.func @transform_7(%arg0: i32) -> (i32, i32) {
    %c0_i32 = arith.constant 0 : i32
    %c0_i32_0 = arith.constant 0 : i32
    %c0_i32_1 = arith.constant 0 : i32
    return %c0_i32, %c0_i32_0 : i32, i32
  }
  func.func @transform_8(%arg0: i32) -> (i32, i32) {
    %c0_i32 = arith.constant 0 : i32
    %c0_i32_0 = arith.constant 0 : i32
    %c0_i32_1 = arith.constant 0 : i32
    return %c0_i32, %c0_i32_0 : i32, i32
  }
  func.func @transform_9(%arg0: i32) -> (i32, i32) {
    %c0_i32 = arith.constant 0 : i32
    %c0_i32_0 = arith.constant 0 : i32
    return %arg0, %c0_i32 : i32, i32
  }
  func.func @transform_10(%arg0: i32) -> (i32, i32) {
    %c0_i32 = arith.constant 0 : i32
    %c0_i32_0 = arith.constant 0 : i32
    return %arg0, %c0_i32 : i32, i32
  }
}

</mosaic_0001>

<llo_original>
// kernel: dsnet_forward.1
$region0: #{dsnet_forward.1}
  #allocation0 [shape = 'u32[]', space=smem, size = 0x4, offset = 0x4, fixed_abs, tag = 'smem constant byte address 0x4 - core index']
  #allocation1 [shape = 'u32[144,128]{1,0:T(1,128)}', space=vmem, size = 0x12000, scoped, tag = 'internal scratch']
  %s0 = inlined_call_operand.hbm [shape: f32[2,8,32], index: 0, kind: input, shape index: {}]
  %s1 = inlined_call_operand.hbm [shape: bf16[32,256], index: 1, kind: input, shape index: {}]
  %s2 = inlined_call_operand.vmem [shape: f32[1,256], index: 2, kind: input, shape index: {}]
  %s3 = inlined_call_operand.hbm [shape: bf16[256,128], index: 3, kind: input, shape index: {}]
  %s4 = inlined_call_operand.vmem [shape: f32[1,128], index: 4, kind: input, shape index: {}]
  %s5 = inlined_call_operand.hbm [shape: bf16[128,128], index: 5, kind: input, shape index: {}]
  %s6 = inlined_call_operand.vmem [shape: f32[1,128], index: 6, kind: input, shape index: {}]
  %s7 = inlined_call_operand.hbm [shape: bf16[512,128], index: 7, kind: input, shape index: {}]
  %s8 = inlined_call_operand.vmem [shape: f32[1,128], index: 8, kind: input, shape index: {}]
  %s9 = inlined_call_operand.hbm [shape: f32[2,512], index: 9, kind: output, shape index: {0}]
  %s10 = inlined_call_operand.vmem [shape: f32[2,128], index: 10, kind: output, shape index: {1}]
  %11 = xla_tuple %s9, %s10
  %s12 = sld [smem:[#allocation0]]
  $region74: #{dsnet_forward.1} parent=0
    _
  %s14 = ssub.s32 1, %s12
  %s15 = scalar_select 0, %s14, %s12
  $region1: #{dsnet_forward.1} parent=0
    #allocation2 [shape = 'u8[8192]{0}', space=vmem, size = 0x2000, scoped, tag = 'input window, operand 0, single buffered']
    #allocation3 [shape = 's32[1]{0}', space=sflag, size = 0x4, scoped, tag = 'scoped memory for dsnet_forward.1']
    #allocation4 [shape = 's32[1]{0}', space=sflag, size = 0x4, scoped, tag = 'scoped memory for dsnet_forward.1']
    #allocation5 [shape = 'u8[16384]{0}', space=vmem, size = 0x4000, scoped, tag = 'input window, operand 1, single buffered']
    #allocation6 [shape = 's32[1]{0}', space=sflag, size = 0x4, scoped, tag = 'scoped memory for dsnet_forward.1']
    #allocation7 [shape = 'u8[65536]{0}', space=vmem, size = 0x10000, scoped, tag = 'input window, operand 3, single buffered']
    #allocation8 [shape = 'u8[32768]{0}', space=vmem, size = 0x8000, scoped, tag = 'input window, operand 5, single buffered']
    #allocation9 [shape = 's32[1]{0}', space=sflag, size = 0x4, scoped, tag = 'scoped memory for dsnet_forward.1']
    #allocation10 [shape = 'u8[131072]{0}', space=vmem, size = 0x20000, scoped, tag = 'input window, operand 7, single buffered']
    #allocation11 [shape = 'u8[4096]{0}', space=vmem, size = 0x1000, scoped, tag = 'output window, operand 0, single buffered']
    %16 = vsyncpa [#allocation3], 0
    %17 = vsyncpa [#allocation6], 0
    %18 = vsyncpa [#allocation9], 0
    %19 = vsyncpa [#allocation4], 0
    // Predicated region
    $region2: #{dsnet_forward.1} parent=1 // pred_check
      _
    $region3: #{dsnet_forward.1} parent=1 // pred_check_branch
      %21 = sbr.rel (0) target = $region5
    $region4: #{dsnet_forward.1} parent=1 // pred_region
      %s23 = ssub.s32 256, 256
      %24 = vsyncadd [#allocation3], %s23
      %s25 = sshll.u32 [#allocation2], 4
      %s26 = int_to_ptr.vmem [resolvable:$true] %s25
      %31 = dma.hbm_to_vmem [thread:$0]  %s0, 256, %s26, [#allocation3], 128, 128, 8
    $region5: #{dsnet_forward.1} parent=1 // pred_fallthru
      _
    // Predicated region
    $region6: #{dsnet_forward.1} parent=1 // pred_check
      _
    $region7: #{dsnet_forward.1} parent=1 // pred_check_branch
      %33 = sbr.rel (0) target = $region9
    $region8: #{dsnet_forward.1} parent=1 // pred_region
      %s35 = ssub.s32 512, 512
      %36 = vsyncadd [#allocation6], %s35
      %s37 = sshll.u32 [#allocation5], 4
      %s38 = int_to_ptr.vmem [resolvable:$true] %s37
      %43 = dma.hbm_to_vmem [thread:$0]  %s1, 512, %s38, [#allocation6], 128, 128, 8
    $region9: #{dsnet_forward.1} parent=1 // pred_fallthru
      _
    // Predicated region
    $region10: #{dsnet_forward.1} parent=1 // pred_check
      _
    $region11: #{dsnet_forward.1} parent=1 // pred_check_branch
      %45 = sbr.rel (0) target = $region13
    $region12: #{dsnet_forward.1} parent=1 // pred_region
      _
    $region13: #{dsnet_forward.1} parent=1 // pred_fallthru
      _
    // Predicated region
    $region14: #{dsnet_forward.1} parent=1 // pred_check
      _
    $region15: #{dsnet_forward.1} parent=1 // pred_check_branch
      %47 = sbr.rel (0) target = $region17
    $region16: #{dsnet_forward.1} parent=1 // pred_region
      %s49 = ssub.s32 2048, 2048
      %50 = vsyncadd [#allocation6], %s49
      %s51 = sshll.u32 [#allocation7], 4
      %s52 = int_to_ptr.vmem [resolvable:$true] %s51
      %57 = dma.hbm_to_vmem [thread:$0]  %s3, 2048, %s52, [#allocation6], 64, 64, 4
    $region17: #{dsnet_forward.1} parent=1 // pred_fallthru
      _
    // Predicated region
    $region18: #{dsnet_forward.1} parent=1 // pred_check
      _
    $region19: #{dsnet_forward.1} parent=1 // pred_check_branch
      %59 = sbr.rel (0) target = $region21
    $region20: #{dsnet_forward.1} parent=1 // pred_region
      _
    $region21: #{dsnet_forward.1} parent=1 // pred_fallthru
      _
    // Predicated region
    $region22: #{dsnet_forward.1} parent=1 // pred_check
      _
    $region23: #{dsnet_forward.1} parent=1 // pred_check_branch
      %61 = sbr.rel (0) target = $region25
    $region24: #{dsnet_forward.1} parent=1 // pred_region
      %s63 = ssub.s32 1024, 1024
      %64 = vsyncadd [#allocation9], %s63
      %s65 = sshll.u32 [#allocation8], 4
      %s66 = int_to_ptr.vmem [resolvable:$true] %s65
      %71 = dma.hbm_to_vmem [thread:$0]  %s5, 1024, %s66, [#allocation9], 64, 64, 4
    $region25: #{dsnet_forward.1} parent=1 // pred_fallthru
      _
    // Predicated region
    $region26: #{dsnet_forward.1} parent=1 // pred_check
      _
    $region27: #{dsnet_forward.1} parent=1 // pred_check_branch
      %73 = sbr.rel (0) target = $region29
    $region28: #{dsnet_forward.1} parent=1 // pred_region
      _
    $region29: #{dsnet_forward.1} parent=1 // pred_fallthru
      _
    // Predicated region
    $region30: #{dsnet_forward.1} parent=1 // pred_check
      _
    $region31: #{dsnet_forward.1} parent=1 // pred_check_branch
      %75 = sbr.rel (0) target = $region33
    $region32: #{dsnet_forward.1} parent=1 // pred_region
      %s77 = ssub.s32 4096, 4096
      %78 = vsyncadd [#allocation9], %s77
      %s79 = sshll.u32 [#allocation10], 4
      %s80 = int_to_ptr.vmem [resolvable:$true] %s79
      %85 = dma.hbm_to_vmem [thread:$0]  %s7, 4096, %s80, [#allocation9], 64, 64, 4
    $region33: #{dsnet_forward.1} parent=1 // pred_fallthru
      _
    // Predicated region
    $region34: #{dsnet_forward.1} parent=1 // pred_check
      _
    $region35: #{dsnet_forward.1} parent=1 // pred_check_branch
      %87 = sbr.rel (0) target = $region37
    $region36: #{dsnet_forward.1} parent=1 // pred_region
      _
    $region37: #{dsnet_forward.1} parent=1 // pred_fallthru
      _
    // Predicated region
    $region38: #{dsnet_forward.1} parent=1 // pred_check
      _
    $region39: #{dsnet_forward.1} parent=1 // pred_check_branch
      %89 = sbr.rel (0) target = $region41
    $region40: #{dsnet_forward.1} parent=1 // pred_region
      %90 = dma.done [#allocation3], 256
    $region41: #{dsnet_forward.1} parent=1 // pred_fallthru
      _
    // Predicated region
    $region42: #{dsnet_forward.1} parent=1 // pred_check
      _
    $region43: #{dsnet_forward.1} parent=1 // pred_check_branch
      %92 = sbr.rel (0) target = $region45
    $region44: #{dsnet_forward.1} parent=1 // pred_region
      %93 = dma.done [#allocation6], 512
    $region45: #{dsnet_forward.1} parent=1 // pred_fallthru
      _
    // Predicated region
    $region46: #{dsnet_forward.1} parent=1 // pred_check
      _
    $region47: #{dsnet_forward.1} parent=1 // pred_check_branch
      %95 = sbr.rel (0) target = $region49
    $region48: #{dsnet_forward.1} parent=1 // pred_region
      %96 = dma.done [#allocation6], 2048
    $region49: #{dsnet_forward.1} parent=1 // pred_fallthru
      _
    // Predicated region
    $region50: #{dsnet_forward.1} parent=1 // pred_check
      _
    $region51: #{dsnet_forward.1} parent=1 // pred_check_branch
      %98 = sbr.rel (0) target = $region53
    $region52: #{dsnet_forward.1} parent=1 // pred_region
      %99 = dma.done [#allocation9], 1024
    $region53: #{dsnet_forward.1} parent=1 // pred_fallthru
      _
    // Predicated region
    $region54: #{dsnet_forward.1} parent=1 // pred_check
      _
    $region55: #{dsnet_forward.1} parent=1 // pred_check_branch
      %101 = sbr.rel (0) target = $region57
    $region56: #{dsnet_forward.1} parent=1 // pred_region
      %102 = dma.done [#allocation9], 4096
    $region57: #{dsnet_forward.1} parent=1 // pred_fallthru
      _
    %v104 = vld [vmem:[#allocation2] sm:$0xff]
    %v105 = vld [vmem:[#allocation2 + $0x8] sm:$0xff]
    %v106 = vpack.c.bf16 %v105, %v104
    %v107 = vld [vmem:[#allocation5] sm:$0xff]
    %v108 = vld [vmem:[#allocation5 + $0x8] sm:$0xff]
    %v109 = vld [vmem:[#allocation5 + $0x10] sm:$0xff]
    %v110 = vld [vmem:[#allocation5 + $0x18] sm:$0xff]
    %v111 = vld [vmem:[%s2] sm:$0x3]
    %v113 = vlaneseq
    %v114 = vshrl.u32 %v113, 7
    %v115 = vsub.s32 0, %v114
    %v116 = vrot.slane %v111, %v115
    %v117 = vlaneseq
    %v118 = vshrl.u32 %v117, 7
    %v119 = vsub.s32 1, %v118
    %v120 = vrot.slane %v111, %v119
    %v127 = vunpack.c.l.b16 %v107
    %v128 = vunpack.c.h.b16 %v107
    %v129 = vunpack.c.l.b16 %v108
    %v130 = vunpack.c.h.b16 %v108
    %v131 = vunpack.c.l.b16 %v109
    %v132 = vunpack.c.h.b16 %v109
    %v133 = vunpack.c.l.b16 %v110
    %v134 = vunpack.c.h.b16 %v110
    %v135 = vpack.c.b16 %v129, %v127
    %v136 = vpack.c.b16 %v130, %v128
    %v137 = vpack.c.b16 %v133, %v131
    %v138 = vpack.c.b16 %v134, %v132
    %vm143 = vcmask 261120
    %v145 = vsel %vm143, %v106, 0
    %147 = vmatprep.subr.bf16.mxu0 0
    %148 = vmatpush1.bf16.msra.mxu0 0
    %149 = vmatprep.subr.bf16.mxu0 0
    %150 = vmatpush1.bf16.msra.mxu0 0
    %151 = vmatprep.subr.bf16.mxu0 0
    %152 = vmatpush1.bf16.msra.mxu0 0
    %153 = vmatprep.subr.bf16.mxu0 0
    %154 = vmatpush1.bf16.msra.mxu0 0
    %155 = vmatprep.subr.bf16.mxu0 0
    %156 = vmatpush1.bf16.msra.mxu0 0
    %157 = vmatprep.subr.bf16.mxu0 0
    %158 = vmatpush1.bf16.msra.mxu0 0
    %159 = vmatprep.subr.bf16.mxu0 %v138
    %160 = vmatpush1.bf16.msra.mxu0 %v137
    %161 = vmatprep.subr.bf16.mxu0 %v136
    %162 = vmatpush1.bf16.msra.mxu0 %v135
    %163 = vmatprep.subr.bf16.mxu0 0
    %164 = vmatpush2.bf16.msra.mxu0 0
    %165 = vmatprep.subr.bf16.mxu0 0
    %166 = vmatpush2.bf16.msra.mxu0 0
    %167 = vmatprep.subr.bf16.mxu0 0
    %168 = vmatpush2.bf16.msra.mxu0 0
    %169 = vmatprep.subr.bf16.mxu0 0
    %170 = vmatpush2.bf16.msra.mxu0 0
    %171 = vmatprep.subr.bf16.mxu0 0
    %172 = vmatpush2.bf16.msra.mxu0 0
    %173 = vmatprep.subr.bf16.mxu0 0
    %174 = vmatpush2.bf16.msra.mxu0 0
    %175 = vmatprep.subr.bf16.mxu0 0
    %176 = vmatpush2.bf16.msra.mxu0 0
    %177 = vmatprep.subr.bf16.mxu0 0
    %178 = vmatpush2.bf16.msra.mxu0 0
    %179 = vmatprep.mubr.bf16.mxu0 0
    %180 = vmatmul.mubr.bf16.gmra.mxu0 %v145
    %v181 = vpop.f32.mrf.mxu0
    %v182 = vadd.f32 %v116, %v181
    %v183 = vpop.f32.mrf.mxu0
    %v184 = vadd.f32 %v120, %v183
    %v185 = vpop.f32.mrf.mxu0
    %v186 = vadd.f32 %v116, %v185
    %v187 = vpop.f32.mrf.mxu0
    %v188 = vadd.f32 %v120, %v187
    %189 = vdwg.mxu0
    %v190 = vmax.f32 %v182, 0.0
    %v191 = vmax.f32 %v184, 0.0
    %v192 = vmax.f32 %v186, 0.0
    %v193 = vmax.f32 %v188, 0.0
    %v194 = vpack.c.bf16 %v192, %v190
    %v195 = vpack.c.bf16 %v193, %v191
    %v196 = vld [vmem:[#allocation7] sm:$0xf]
    %v197 = vld [vmem:[#allocation7 + $0x4] sm:$0xf]
    %v198 = vld [vmem:[#allocation7 + $0x8] sm:$0xf]
    %v199 = vld [vmem:[#allocation7 + $0xc] sm:$0xf]
    %v200 = vld [vmem:[#allocation7 + $0x10] sm:$0xf]
    %v201 = vld [vmem:[#allocation7 + $0x14] sm:$0xf]
    %v202 = vld [vmem:[#allocation7 + $0x18] sm:$0xf]
    %v203 = vld [vmem:[#allocation7 + $0x1c] sm:$0xf]
    %v204 = vld [vmem:[#allocation7 + $0x20] sm:$0xf]
    %v205 = vld [vmem:[#allocation7 + $0x24] sm:$0xf]
    %v206 = vld [vmem:[#allocation7 + $0x28] sm:$0xf]
    %v207 = vld [vmem:[#allocation7 + $0x2c] sm:$0xf]
    %v208 = vld [vmem:[#allocation7 + $0x30] sm:$0xf]
    %v209 = vld [vmem:[#allocation7 + $0x34] sm:$0xf]
    %v210 = vld [vmem:[#allocation7 + $0x38] sm:$0xf]
    %v211 = vld [vmem:[#allocation7 + $0x3c] sm:$0xf]
    %v212 = vld [vmem:[#allocation7 + $0x40] sm:$0xf]
    %v213 = vld [vmem:[#allocation7 + $0x44] sm:$0xf]
    %v214 = vld [vmem:[#allocation7 + $0x48] sm:$0xf]
    %v215 = vld [vmem:[#allocation7 + $0x4c] sm:$0xf]
    %v216 = vld [vmem:[#allocation7 + $0x50] sm:$0xf]
    %v217 = vld [vmem:[#allocation7 + $0x54] sm:$0xf]
    %v218 = vld [vmem:[#allocation7 + $0x58] sm:$0xf]
    %v219 = vld [vmem:[#allocation7 + $0x5c] sm:$0xf]
    %v220 = vld [vmem:[#allocation7 + $0x60] sm:$0xf]
    %v221 = vld [vmem:[#allocation7 + $0x64] sm:$0xf]
    %v222 = vld [vmem:[#allocation7 + $0x68] sm:$0xf]
    %v223 = vld [vmem:[#allocation7 + $0x6c] sm:$0xf]
    %v224 = vld [vmem:[#allocation7 + $0x70] sm:$0xf]
    %v225 = vld [vmem:[#allocation7 + $0x74] sm:$0xf]
    %v226 = vld [vmem:[#allocation7 + $0x78] sm:$0xf]
    %v227 = vld [vmem:[#allocation7 + $0x7c] sm:$0xf]
    %v228 = vld [vmem:[%s4] sm:$0x1]
    %v230 = vlaneseq
    %v231 = vshrl.u32 %v230, 7
    %v232 = vsub.s32 0, %v231
    %v233 = vrot.slane %v228, %v232
    %v267 = vunpack.c.l.b16 %v196
    %v268 = vunpack.c.l.b16 %v197
    %v269 = vunpack.c.l.b16 %v198
    %v270 = vunpack.c.l.b16 %v199
    %v271 = vunpack.c.l.b16 %v200
    %v272 = vunpack.c.l.b16 %v201
    %v273 = vunpack.c.l.b16 %v202
    %v274 = vunpack.c.l.b16 %v203
    %v275 = vunpack.c.l.b16 %v204
    %v276 = vunpack.c.l.b16 %v205
    %v277 = vunpack.c.l.b16 %v206
    %v278 = vunpack.c.l.b16 %v207
    %v279 = vunpack.c.l.b16 %v208
    %v280 = vunpack.c.l.b16 %v209
    %v281 = vunpack.c.l.b16 %v210
    %v282 = vunpack.c.l.b16 %v211
    %v283 = vunpack.c.l.b16 %v212
    %v284 = vunpack.c.l.b16 %v213
    %v285 = vunpack.c.l.b16 %v214
    %v286 = vunpack.c.l.b16 %v215
    %v287 = vunpack.c.l.b16 %v216
    %v288 = vunpack.c.l.b16 %v217
    %v289 = vunpack.c.l.b16 %v218
    %v290 = vunpack.c.l.b16 %v219
    %v291 = vunpack.c.l.b16 %v220
    %v292 = vunpack.c.l.b16 %v221
    %v293 = vunpack.c.l.b16 %v222
    %v294 = vunpack.c.l.b16 %v223
    %v295 = vunpack.c.l.b16 %v224
    %v296 = vunpack.c.l.b16 %v225
    %v297 = vunpack.c.l.b16 %v226
    %v298 = vunpack.c.l.b16 %v227
    %v299 = vpack.c.b16 %v268, %v267
    %v300 = vpack.c.b16 %v270, %v269
    %v301 = vpack.c.b16 %v272, %v271
    %v302 = vpack.c.b16 %v274, %v273
    %v303 = vpack.c.b16 %v276, %v275
    %v304 = vpack.c.b16 %v278, %v277
    %v305 = vpack.c.b16 %v280, %v279
    %v306 = vpack.c.b16 %v282, %v281
    %v307 = vpack.c.b16 %v284, %v283
    %v308 = vpack.c.b16 %v286, %v285
    %v309 = vpack.c.b16 %v288, %v287
    %v310 = vpack.c.b16 %v290, %v289
    %v311 = vpack.c.b16 %v292, %v291
    %v312 = vpack.c.b16 %v294, %v293
    %v313 = vpack.c.b16 %v296, %v295
    %v314 = vpack.c.b16 %v298, %v297
    %331 = vmatprep.subr.bf16.mxu0 0
    %332 = vmatpush1.bf16.msra.mxu0 %v306
    %333 = vmatprep.subr.bf16.mxu0 0
    %334 = vmatpush1.bf16.msra.mxu0 %v305
    %335 = vmatprep.subr.bf16.mxu0 0
    %336 = vmatpush1.bf16.msra.mxu0 %v304
    %337 = vmatprep.subr.bf16.mxu0 0
    %338 = vmatpush1.bf16.msra.mxu0 %v303
    %339 = vmatprep.subr.bf16.mxu0 0
    %340 = vmatpush1.bf16.msra.mxu0 %v302
    %341 = vmatprep.subr.bf16.mxu0 0
    %342 = vmatpush1.bf16.msra.mxu0 %v301
    %343 = vmatprep.subr.bf16.mxu0 0
    %344 = vmatpush1.bf16.msra.mxu0 %v300
    %345 = vmatprep.subr.bf16.mxu0 0
    %346 = vmatpush1.bf16.msra.mxu0 %v299
    %347 = vmatprep.subr.bf16.mxu0 0
    %348 = vmatpush2.bf16.msra.mxu0 %v314
    %349 = vmatprep.subr.bf16.mxu0 0
    %350 = vmatpush2.bf16.msra.mxu0 %v313
    %351 = vmatprep.subr.bf16.mxu0 0
    %352 = vmatpush2.bf16.msra.mxu0 %v312
    %353 = vmatprep.subr.bf16.mxu0 0
    %354 = vmatpush2.bf16.msra.mxu0 %v311
    %355 = vmatprep.subr.bf16.mxu0 0
    %356 = vmatpush2.bf16.msra.mxu0 %v310
    %357 = vmatprep.subr.bf16.mxu0 0
    %358 = vmatpush2.bf16.msra.mxu0 %v309
    %359 = vmatprep.subr.bf16.mxu0 0
    %360 = vmatpush2.bf16.msra.mxu0 %v308
    %361 = vmatprep.subr.bf16.mxu0 0
    %362 = vmatpush2.bf16.msra.mxu0 %v307
    %363 = vmatprep.mubr.bf16.mxu0 %v195
    %364 = vmatmul.mubr.bf16.gmra.mxu0 %v194
    %v365 = vpop.f32.mrf.mxu0
    %v366 = vadd.f32 %v233, %v365
    %v367 = vpop.f32.mrf.mxu0
    %v368 = vpop.f32.mrf.mxu0
    %v369 = vadd.f32 %v233, %v368
    %v370 = vpop.f32.mrf.mxu0
    %371 = vdwg.mxu0
    %v372 = vmax.f32 %v366, 0.0
    %v373 = vmax.f32 %v369, 0.0
    %v374 = vpack.c.bf16 %v373, %v372
    %v375 = vld [vmem:[#allocation8] sm:$0xf]
    %v376 = vld [vmem:[#allocation8 + $0x4] sm:$0xf]
    %v377 = vld [vmem:[#allocation8 + $0x8] sm:$0xf]
    %v378 = vld [vmem:[#allocation8 + $0xc] sm:$0xf]
    %v379 = vld [vmem:[#allocation8 + $0x10] sm:$0xf]
    %v380 = vld [vmem:[#allocation8 + $0x14] sm:$0xf]
    %v381 = vld [vmem:[#allocation8 + $0x18] sm:$0xf]
    %v382 = vld [vmem:[#allocation8 + $0x1c] sm:$0xf]
    %v383 = vld [vmem:[#allocation8 + $0x20] sm:$0xf]
    %v384 = vld [vmem:[#allocation8 + $0x24] sm:$0xf]
    %v385 = vld [vmem:[#allocation8 + $0x28] sm:$0xf]
    %v386 = vld [vmem:[#allocation8 + $0x2c] sm:$0xf]
    %v387 = vld [vmem:[#allocation8 + $0x30] sm:$0xf]
    %v388 = vld [vmem:[#allocation8 + $0x34] sm:$0xf]
    %v389 = vld [vmem:[#allocation8 + $0x38] sm:$0xf]
    %v390 = vld [vmem:[#allocation8 + $0x3c] sm:$0xf]
    %v391 = vld [vmem:[%s6] sm:$0x1]
    %v393 = vlaneseq
    %v394 = vshrl.u32 %v393, 7
    %v395 = vsub.s32 0, %v394
    %v396 = vrot.slane %v391, %v395
    %v414 = vunpack.c.l.b16 %v375
    %v415 = vunpack.c.l.b16 %v376
    %v416 = vunpack.c.l.b16 %v377
    %v417 = vunpack.c.l.b16 %v378
    %v418 = vunpack.c.l.b16 %v379
    %v419 = vunpack.c.l.b16 %v380
    %v420 = vunpack.c.l.b16 %v381
    %v421 = vunpack.c.l.b16 %v382
    %v422 = vunpack.c.l.b16 %v383
    %v423 = vunpack.c.l.b16 %v384
    %v424 = vunpack.c.l.b16 %v385
    %v425 = vunpack.c.l.b16 %v386
    %v426 = vunpack.c.l.b16 %v387
    %v427 = vunpack.c.l.b16 %v388
    %v428 = vunpack.c.l.b16 %v389
    %v429 = vunpack.c.l.b16 %v390
    %v430 = vpack.c.b16 %v415, %v414
    %v431 = vpack.c.b16 %v417, %v416
    %v432 = vpack.c.b16 %v419, %v418
    %v433 = vpack.c.b16 %v421, %v420
    %v434 = vpack.c.b16 %v423, %v422
    %v435 = vpack.c.b16 %v425, %v424
    %v436 = vpack.c.b16 %v427, %v426
    %v437 = vpack.c.b16 %v429, %v428
    %446 = vmatprep.subr.bf16.mxu0 0
    %447 = vmatpush1.bf16.msra.mxu0 %v437
    %448 = vmatprep.subr.bf16.mxu0 0
    %449 = vmatpush1.bf16.msra.mxu0 %v436
    %450 = vmatprep.subr.bf16.mxu0 0
    %451 = vmatpush1.bf16.msra.mxu0 %v435
    %452 = vmatprep.subr.bf16.mxu0 0
    %453 = vmatpush1.bf16.msra.mxu0 %v434
    %454 = vmatprep.subr.bf16.mxu0 0
    %455 = vmatpush1.bf16.msra.mxu0 %v433
    %456 = vmatprep.subr.bf16.mxu0 0
    %457 = vmatpush1.bf16.msra.mxu0 %v432
    %458 = vmatprep.subr.bf16.mxu0 0
    %459 = vmatpush1.bf16.msra.mxu0 %v431
    %460 = vmatprep.subr.bf16.mxu0 0
    %461 = vmatpush1.bf16.msra.mxu0 %v430
    %462 = vmatprep.subr.bf16.mxu0 0
    %463 = vmatpush2.bf16.msra.mxu0 0
    %464 = vmatprep.subr.bf16.mxu0 0
    %465 = vmatpush2.bf16.msra.mxu0 0
    %466 = vmatprep.subr.bf16.mxu0 0
    %467 = vmatpush2.bf16.msra.mxu0 0
    %468 = vmatprep.subr.bf16.mxu0 0
    %469 = vmatpush2.bf16.msra.mxu0 0
    %470 = vmatprep.subr.bf16.mxu0 0
    %471 = vmatpush2.bf16.msra.mxu0 0
    %472 = vmatprep.subr.bf16.mxu0 0
    %473 = vmatpush2.bf16.msra.mxu0 0
    %474 = vmatprep.subr.bf16.mxu0 0
    %475 = vmatpush2.bf16.msra.mxu0 0
    %476 = vmatprep.subr.bf16.mxu0 0
    %477 = vmatpush2.bf16.msra.mxu0 0
    %478 = vmatprep.mubr.bf16.mxu0 0
    %479 = vmatmul.mubr.bf16.gmra.mxu0 %v374
    %v480 = vpop.f32.mrf.mxu0
    %v481 = vadd.f32 %v396, %v480
    %v482 = vpop.f32.mrf.mxu0
    %v483 = vpop.f32.mrf.mxu0
    %v484 = vadd.f32 %v396, %v483
    %v485 = vpop.f32.mrf.mxu0
    %486 = vdwg.mxu0
    %v487 = vmax.f32 %v481, 0.0
    %v488 = vmax.f32 %v484, 0.0
    %v489 = vrot.slane %v190, 4
    %v490 = vmax.f32 %v190, %v489
    %v491 = vrot.slane %v490, 2
    %v492 = vmax.f32 %v490, %v491
    %v493 = vrot.slane %v492, 1
    %v494 = vmax.f32 %v492, %v493
    %v495 = vrot.slane %v191, 4
    %v496 = vmax.f32 %v191, %v495
    %v497 = vrot.slane %v496, 2
    %v498 = vmax.f32 %v496, %v497
    %v499 = vrot.slane %v498, 1
    %v500 = vmax.f32 %v498, %v499
    %v501 = vrot.slane %v192, 4
    %v502 = vmax.f32 %v192, %v501
    %v503 = vrot.slane %v502, 2
    %v504 = vmax.f32 %v502, %v503
    %v505 = vrot.slane %v504, 1
    %v506 = vmax.f32 %v504, %v505
    %v507 = vrot.slane %v193, 4
    %v508 = vmax.f32 %v193, %v507
    %v509 = vrot.slane %v508, 2
    %v510 = vmax.f32 %v508, %v509
    %v511 = vrot.slane %v510, 1
    %v512 = vmax.f32 %v510, %v511
    %v513 = vrot.slane %v372, 4
    %v514 = vmax.f32 %v372, %v513
    %v515 = vrot.slane %v514, 2
    %v516 = vmax.f32 %v514, %v515
    %v517 = vrot.slane %v516, 1
    %v518 = vmax.f32 %v516, %v517
    %v519 = vrot.slane %v373, 4
    %v520 = vmax.f32 %v373, %v519
    %v521 = vrot.slane %v520, 2
    %v522 = vmax.f32 %v520, %v521
    %v523 = vrot.slane %v522, 1
    %v524 = vmax.f32 %v522, %v523
    %v525 = vrot.slane %v487, 4
    %v526 = vmax.f32 %v487, %v525
    %v527 = vrot.slane %v526, 2
    %v528 = vmax.f32 %v526, %v527
    %v529 = vrot.slane %v528, 1
    %v530 = vmax.f32 %v528, %v529
    %v531 = vrot.slane %v488, 4
    %v532 = vmax.f32 %v488, %v531
    %v533 = vrot.slane %v532, 2
    %v534 = vmax.f32 %v532, %v533
    %v535 = vrot.slane %v534, 1
    %v536 = vmax.f32 %v534, %v535
    %vm541 = vcmask 1041409
    %v542 = vsel %vm541, %v506, %v494
    %v543 = vsel %vm541, %v512, %v500
    %v548 = vsel %vm541, %v524, %v518
    %v552 = vsel %vm541, %v536, %v530
    %v554 = vcombine.low %v542, %v543
    %v555 = vcombine.low %v548, %v552
    %v557 = vunpack.c.l.s4 1983009808
    %v558 = vunpack.c.0.s8 %v557
    %v559 = vlaneseq
    %v560 = vshrl.u32 %v559, 7
    %v561 = vsub.s32 %v558, %v560
    %v562 = vrot.slane %v554, %v561
    %v564 = vunpack.c.l.s4 1983009808
    %v565 = vunpack.c.0.s8 %v564
    %v566 = vlaneseq
    %v567 = vshrl.u32 %v566, 7
    %v568 = vsub.s32 %v565, %v567
    %v569 = vrot.slane %v555, %v568
    %v570 = vcombine.low %v562, %v569
    %572 = vst [vmem:[#allocation11] sm:$0xff] %v570
    %v573 = vpack.c.bf16 %v542, %v542
    %v574 = vpack.c.bf16 %v543, %v543
    %v575 = vpack.c.bf16 %v548, %v548
    %v576 = vpack.c.bf16 %v552, %v552
    %v577 = vld [vmem:[#allocation10] sm:$0xf]
    %v578 = vld [vmem:[#allocation10 + $0x4] sm:$0xf]
    %v579 = vld [vmem:[#allocation10 + $0x8] sm:$0xf]
    %v580 = vld [vmem:[#allocation10 + $0xc] sm:$0xf]
    %v581 = vld [vmem:[#allocation10 + $0x10] sm:$0xf]
    %v582 = vld [vmem:[#allocation10 + $0x14] sm:$0xf]
    %v583 = vld [vmem:[#allocation10 + $0x18] sm:$0xf]
    %v584 = vld [vmem:[#allocation10 + $0x1c] sm:$0xf]
    %v585 = vld [vmem:[#allocation10 + $0x20] sm:$0xf]
    %v586 = vld [vmem:[#allocation10 + $0x24] sm:$0xf]
    %v587 = vld [vmem:[#allocation10 + $0x28] sm:$0xf]
    %v588 = vld [vmem:[#allocation10 + $0x2c] sm:$0xf]
    %v589 = vld [vmem:[#allocation10 + $0x30] sm:$0xf]
    %v590 = vld [vmem:[#allocation10 + $0x34] sm:$0xf]
    %v591 = vld [vmem:[#allocation10 + $0x38] sm:$0xf]
    %v592 = vld [vmem:[#allocation10 + $0x3c] sm:$0xf]
    %v593 = vld [vmem:[#allocation10 + $0x40] sm:$0xf]
    %v594 = vld [vmem:[#allocation10 + $0x44] sm:$0xf]
    %v595 = vld [vmem:[#allocation10 + $0x48] sm:$0xf]
    %v596 = vld [vmem:[#allocation10 + $0x4c] sm:$0xf]
    %v597 = vld [vmem:[#allocation10 + $0x50] sm:$0xf]
    %v598 = vld [vmem:[#allocation10 + $0x54] sm:$0xf]
    %v599 = vld [vmem:[#allocation10 + $0x58] sm:$0xf]
    %v600 = vld [vmem:[#allocation10 + $0x5c] sm:$0xf]
    %v601 = vld [vmem:[#allocation10 + $0x60] sm:$0xf]
    %v602 = vld [vmem:[#allocation10 + $0x64] sm:$0xf]
    %v603 = vld [vmem:[#allocation10 + $0x68] sm:$0xf]
    %v604 = vld [vmem:[#allocation10 + $0x6c] sm:$0xf]
    %v605 = vld [vmem:[#allocation10 + $0x70] sm:$0xf]
    %v606 = vld [vmem:[#allocation10 + $0x74] sm:$0xf]
    %v607 = vld [vmem:[#allocation10 + $0x78] sm:$0xf]
    %v608 = vld [vmem:[#allocation10 + $0x7c] sm:$0xf]
    %v609 = vld [vmem:[#allocation10 + $0x80] sm:$0xf]
    %v610 = vld [vmem:[#allocation10 + $0x84] sm:$0xf]
    %v611 = vld [vmem:[#allocation10 + $0x88] sm:$0xf]
    %v612 = vld [vmem:[#allocation10 + $0x8c] sm:$0xf]
    %v613 = vld [vmem:[#allocation10 + $0x90] sm:$0xf]
    %v614 = vld [vmem:[#allocation10 + $0x94] sm:$0xf]
    %v615 = vld [vmem:[#allocation10 + $0x98] sm:$0xf]
    %v616 = vld [vmem:[#allocation10 + $0x9c] sm:$0xf]
    %v617 = vld [vmem:[#allocation10 + $0xa0] sm:$0xf]
    %v618 = vld [vmem:[#allocation10 + $0xa4] sm:$0xf]
    %v619 = vld [vmem:[#allocation10 + $0xa8] sm:$0xf]
    %v620 = vld [vmem:[#allocation10 + $0xac] sm:$0xf]
    %v621 = vld [vmem:[#allocation10 + $0xb0] sm:$0xf]
    %v622 = vld [vmem:[#allocation10 + $0xb4] sm:$0xf]
    %v623 = vld [vmem:[#allocation10 + $0xb8] sm:$0xf]
    %v624 = vld [vmem:[#allocation10 + $0xbc] sm:$0xf]
    %v625 = vld [vmem:[#allocation10 + $0xc0] sm:$0xf]
    %v626 = vld [vmem:[#allocation10 + $0xc4] sm:$0xf]
    %v627 = vld [vmem:[#allocation10 + $0xc8] sm:$0xf]
    %v628 = vld [vmem:[#allocation10 + $0xcc] sm:$0xf]
    %v629 = vld [vmem:[#allocation10 + $0xd0] sm:$0xf]
    %v630 = vld [vmem:[#allocation10 + $0xd4] sm:$0xf]
    %v631 = vld [vmem:[#allocation10 + $0xd8] sm:$0xf]
    %v632 = vld [vmem:[#allocation10 + $0xdc] sm:$0xf]
    %v633 = vld [vmem:[#allocation10 + $0xe0] sm:$0xf]
    %v634 = vld [vmem:[#allocation10 + $0xe4] sm:$0xf]
    %v635 = vld [vmem:[#allocation10 + $0xe8] sm:$0xf]
    %v636 = vld [vmem:[#allocation10 + $0xec] sm:$0xf]
    %v637 = vld [vmem:[#allocation10 + $0xf0] sm:$0xf]
    %v638 = vld [vmem:[#allocation10 + $0xf4] sm:$0xf]
    %v639 = vld [vmem:[#allocation10 + $0xf8] sm:$0xf]
    %v640 = vld [vmem:[#allocation10 + $0xfc] sm:$0xf]
    %v641 = vld [vmem:[%s8] sm:$0x1]
    %v643 = vlaneseq
    %v644 = vshrl.u32 %v643, 7
    %v645 = vsub.s32 0, %v644
    %v646 = vrot.slane %v641, %v645
    %v712 = vunpack.c.l.b16 %v577
    %v713 = vunpack.c.l.b16 %v578
    %v714 = vunpack.c.l.b16 %v579
    %v715 = vunpack.c.l.b16 %v580
    %v716 = vunpack.c.l.b16 %v581
    %v717 = vunpack.c.l.b16 %v582
    %v718 = vunpack.c.l.b16 %v583
    %v719 = vunpack.c.l.b16 %v584
    %v720 = vunpack.c.l.b16 %v585
    %v721 = vunpack.c.l.b16 %v586
    %v722 = vunpack.c.l.b16 %v587
    %v723 = vunpack.c.l.b16 %v588
    %v724 = vunpack.c.l.b16 %v589
    %v725 = vunpack.c.l.b16 %v590
    %v726 = vunpack.c.l.b16 %v591
    %v727 = vunpack.c.l.b16 %v592
    %v728 = vunpack.c.l.b16 %v593
    %v729 = vunpack.c.l.b16 %v594
    %v730 = vunpack.c.l.b16 %v595
    %v731 = vunpack.c.l.b16 %v596
    %v732 = vunpack.c.l.b16 %v597
    %v733 = vunpack.c.l.b16 %v598
    %v734 = vunpack.c.l.b16 %v599
    %v735 = vunpack.c.l.b16 %v600
    %v736 = vunpack.c.l.b16 %v601
    %v737 = vunpack.c.l.b16 %v602
    %v738 = vunpack.c.l.b16 %v603
    %v739 = vunpack.c.l.b16 %v604
    %v740 = vunpack.c.l.b16 %v605
    %v741 = vunpack.c.l.b16 %v606
    %v742 = vunpack.c.l.b16 %v607
    %v743 = vunpack.c.l.b16 %v608
    %v744 = vunpack.c.l.b16 %v609
    %v745 = vunpack.c.l.b16 %v610
    %v746 = vunpack.c.l.b16 %v611
    %v747 = vunpack.c.l.b16 %v612
    %v748 = vunpack.c.l.b16 %v613
    %v749 = vunpack.c.l.b16 %v614
    %v750 = vunpack.c.l.b16 %v615
    %v751 = vunpack.c.l.b16 %v616
    %v752 = vunpack.c.l.b16 %v617
    %v753 = vunpack.c.l.b16 %v618
    %v754 = vunpack.c.l.b16 %v619
    %v755 = vunpack.c.l.b16 %v620
    %v756 = vunpack.c.l.b16 %v621
    %v757 = vunpack.c.l.b16 %v622
    %v758 = vunpack.c.l.b16 %v623
    %v759 = vunpack.c.l.b16 %v624
    %v760 = vunpack.c.l.b16 %v625
    %v761 = vunpack.c.l.b16 %v626
    %v762 = vunpack.c.l.b16 %v627
    %v763 = vunpack.c.l.b16 %v628
    %v764 = vunpack.c.l.b16 %v629
    %v765 = vunpack.c.l.b16 %v630
    %v766 = vunpack.c.l.b16 %v631
    %v767 = vunpack.c.l.b16 %v632
    %v768 = vunpack.c.l.b16 %v633
    %v769 = vunpack.c.l.b16 %v634
    %v770 = vunpack.c.l.b16 %v635
    %v771 = vunpack.c.l.b16 %v636
    %v772 = vunpack.c.l.b16 %v637
    %v773 = vunpack.c.l.b16 %v638
    %v774 = vunpack.c.l.b16 %v639
    %v775 = vunpack.c.l.b16 %v640
    %v776 = vpack.c.b16 %v713, %v712
    %v777 = vpack.c.b16 %v715, %v714
    %v778 = vpack.c.b16 %v717, %v716
    %v779 = vpack.c.b16 %v719, %v718
    %v780 = vpack.c.b16 %v721, %v720
    %v781 = vpack.c.b16 %v723, %v722
    %v782 = vpack.c.b16 %v725, %v724
    %v783 = vpack.c.b16 %v727, %v726
    %v784 = vpack.c.b16 %v729, %v728
    %v785 = vpack.c.b16 %v731, %v730
    %v786 = vpack.c.b16 %v733, %v732
    %v787 = vpack.c.b16 %v735, %v734
    %v788 = vpack.c.b16 %v737, %v736
    %v789 = vpack.c.b16 %v739, %v738
    %v790 = vpack.c.b16 %v741, %v740
    %v791 = vpack.c.b16 %v743, %v742
    %v792 = vpack.c.b16 %v745, %v744
    %v793 = vpack.c.b16 %v747, %v746
    %v794 = vpack.c.b16 %v749, %v748
    %v795 = vpack.c.b16 %v751, %v750
    %v796 = vpack.c.b16 %v753, %v752
    %v797 = vpack.c.b16 %v755, %v754
    %v798 = vpack.c.b16 %v757, %v756
    %v799 = vpack.c.b16 %v759, %v758
    %v800 = vpack.c.b16 %v761, %v760
    %v801 = vpack.c.b16 %v763, %v762
    %v802 = vpack.c.b16 %v765, %v764
    %v803 = vpack.c.b16 %v767, %v766
    %v804 = vpack.c.b16 %v769, %v768
    %v805 = vpack.c.b16 %v771, %v770
    %v806 = vpack.c.b16 %v773, %v772
    %v807 = vpack.c.b16 %v775, %v774
    %840 = vmatprep.subr.bf16.mxu0 0
    %841 = vmatpush1.bf16.msra.mxu0 %v783
    %842 = vmatprep.subr.bf16.mxu0 0
    %843 = vmatpush1.bf16.msra.mxu0 %v782
    %844 = vmatprep.subr.bf16.mxu0 0
    %845 = vmatpush1.bf16.msra.mxu0 %v781
    %846 = vmatprep.subr.bf16.mxu0 0
    %847 = vmatpush1.bf16.msra.mxu0 %v780
    %848 = vmatprep.subr.bf16.mxu0 0
    %849 = vmatpush1.bf16.msra.mxu0 %v779
    %850 = vmatprep.subr.bf16.mxu0 0
    %851 = vmatpush1.bf16.msra.mxu0 %v778
    %852 = vmatprep.subr.bf16.mxu0 0
    %853 = vmatpush1.bf16.msra.mxu0 %v777
    %854 = vmatprep.subr.bf16.mxu0 0
    %855 = vmatpush1.bf16.msra.mxu0 %v776
    %856 = vmatprep.subr.bf16.mxu0 0
    %857 = vmatpush2.bf16.msra.mxu0 %v791
    %858 = vmatprep.subr.bf16.mxu0 0
    %859 = vmatpush2.bf16.msra.mxu0 %v790
    %860 = vmatprep.subr.bf16.mxu0 0
    %861 = vmatpush2.bf16.msra.mxu0 %v789
    %862 = vmatprep.subr.bf16.mxu0 0
    %863 = vmatpush2.bf16.msra.mxu0 %v788
    %864 = vmatprep.subr.bf16.mxu0 0
    %865 = vmatpush2.bf16.msra.mxu0 %v787
    %866 = vmatprep.subr.bf16.mxu0 0
    %867 = vmatpush2.bf16.msra.mxu0 %v786
    %868 = vmatprep.subr.bf16.mxu0 0
    %869 = vmatpush2.bf16.msra.mxu0 %v785
    %870 = vmatprep.subr.bf16.mxu0 0
    %871 = vmatpush2.bf16.msra.mxu0 %v784
    %872 = vmatprep.mubr.bf16.mxu0 %v574
    %873 = vmatmul.mubr.bf16.gmra.mxu0 %v573
    %v874 = vpop.f32.mrf.mxu0
    %v875 = vadd.f32 %v646, %v874
    %v876 = vpop.f32.mrf.mxu0
    %v877 = vpop.f32.mrf.mxu0
    %v878 = vpop.f32.mrf.mxu0
    %879 = vdwg.mxu0
    %880 = vmatprep.subr.bf16.mxu0 0
    %881 = vmatpush1.bf16.msra.mxu0 %v799
    %882 = vmatprep.subr.bf16.mxu0 0
    %883 = vmatpush1.bf16.msra.mxu0 %v798
    %884 = vmatprep.subr.bf16.mxu0 0
    %885 = vmatpush1.bf16.msra.mxu0 %v797
    %886 = vmatprep.subr.bf16.mxu0 0
    %887 = vmatpush1.bf16.msra.mxu0 %v796
    %888 = vmatprep.subr.bf16.mxu0 0
    %889 = vmatpush1.bf16.msra.mxu0 %v795
    %890 = vmatprep.subr.bf16.mxu0 0
    %891 = vmatpush1.bf16.msra.mxu0 %v794
    %892 = vmatprep.subr.bf16.mxu0 0
    %893 = vmatpush1.bf16.msra.mxu0 %v793
    %894 = vmatprep.subr.bf16.mxu0 0
    %895 = vmatpush1.bf16.msra.mxu0 %v792
    %896 = vmatprep.subr.bf16.mxu0 0
    %897 = vmatpush2.bf16.msra.mxu0 %v807
    %898 = vmatprep.subr.bf16.mxu0 0
    %899 = vmatpush2.bf16.msra.mxu0 %v806
    %900 = vmatprep.subr.bf16.mxu0 0
    %901 = vmatpush2.bf16.msra.mxu0 %v805
    %902 = vmatprep.subr.bf16.mxu0 0
    %903 = vmatpush2.bf16.msra.mxu0 %v804
    %904 = vmatprep.subr.bf16.mxu0 0
    %905 = vmatpush2.bf16.msra.mxu0 %v803
    %906 = vmatprep.subr.bf16.mxu0 0
    %907 = vmatpush2.bf16.msra.mxu0 %v802
    %908 = vmatprep.subr.bf16.mxu0 0
    %909 = vmatpush2.bf16.msra.mxu0 %v801
    %910 = vmatprep.subr.bf16.mxu0 0
    %911 = vmatpush2.bf16.msra.mxu0 %v800
    %912 = vmatprep.mubr.bf16.mxu0 %v576
    %913 = vmatmul.mubr.bf16.gmra.mxu0 %v575
    %v914 = vpop.f32.mrf.mxu0
    %v915 = vadd.f32 %v875, %v914
    %v916 = vpop.f32.mrf.mxu0
    %v917 = vpop.f32.mrf.mxu0
    %v918 = vpop.f32.mrf.mxu0
    %919 = vdwg.mxu0
    %v920 = vxor.u32 %v915, 2147483648
    %v921 = vmul.f32 %v920, 1.442695
    %v922 = vpow.pop %v921
    %v923 = vadd.f32 %v922, 1.0
    %v924 = vrcp.pop %v923
    %v925 = vmul.f32 1.0, %v924
    %927 = vrot.lane.b32.xlu0 %v925, 127
    %v928 = vpop.permute.xlu0 %927
    %v930 = vadd.f32 %v925, %v928
    %931 = vrot.lane.b32.xlu0 %v925, 126
    %v932 = vpop.permute.xlu0 %931
    %v934 = vadd.f32 %v930, %v932
    %v935 = vmul.f32 %v934, 0.33333334
    %v936 = vlaneseq
    %v937 = vand.u32 %v936, 127
    %vm938 = vcmp.eq.s32.totalorder %v937, 3
    %940 = vset.pattern.permute.xlu0 0
    %941 = vperm.xlu0 %940, %v935
    %v942 = vpop.permute.xlu0 %941
    %v944 = vsel %vm938, %v942, %v925
    %945 = vst [vmem:[%s10] sm:$0x3] %v944
    // Predicated region
    $region58: #{dsnet_forward.1} parent=1 // pred_check
      _
    $region59: #{dsnet_forward.1} parent=1 // pred_check_branch
      %947 = sbr.rel (0) target = $region61
    $region60: #{dsnet_forward.1} parent=1 // pred_region
      %s949 = ssub.s32 128, 128
      %950 = vsyncadd [#allocation4], %s949
      %s952 = sshll.u32 [#allocation11], 4
      %s953 = int_to_ptr.vmem [resolvable:$true] %s952
      %955 = dma.vmem_to_hbm [thread:$0]  %s953, 128, %s9, [#allocation4]
    $region61: #{dsnet_forward.1} parent=1 // pred_fallthru
      _
    // Predicated region
    $region62: #{dsnet_forward.1} parent=1 // pred_check
      _
    $region63: #{dsnet_forward.1} parent=1 // pred_check_branch
      %957 = sbr.rel (0) target = $region65
    $region64: #{dsnet_forward.1} parent=1 // pred_region
      _
    $region65: #{dsnet_forward.1} parent=1 // pred_fallthru
      _
    // Predicated region
    $region66: #{dsnet_forward.1} parent=1 // pred_check
      _
    $region67: #{dsnet_forward.1} parent=1 // pred_check_branch
      %959 = sbr.rel (0) target = $region69
    $region68: #{dsnet_forward.1} parent=1 // pred_region
      %960 = dma.done [#allocation4], 128
    $region69: #{dsnet_forward.1} parent=1 // pred_fallthru
      _
    // Predicated region
    $region70: #{dsnet_forward.1} parent=1 // pred_check
      _
    $region71: #{dsnet_forward.1} parent=1 // pred_check_branch
      %962 = sbr.rel (0) target = $region73
    $region72: #{dsnet_forward.1} parent=1 // pred_region
      _
    $region73: #{dsnet_forward.1} parent=1 // pred_fallthru
      _
    %963 = vsyncpa [#allocation3], 1
    %964 = vsyncpa [#allocation6], 1
    %965 = vsyncpa [#allocation9], 1
    %966 = vsyncpa [#allocation4], 1

</llo_original>
